<compile_context>
chip_gen: v7x
topology: tpu7x:2x2x1
jax: 0.10.0
libtpu: 0.0.40
codegen_flags: <defaults>
</compile_context>

<pallas_src>
import functools
import math

import jax
import jax.numpy as jnp
from jax import lax
from jax.experimental import pallas as pl
from jax.experimental.pallas import tpu as pltpu


def rmsnorm_kernel(x_ref, w_ref, o_ref, *, eps):
    """One (row_tile, H) block, one logical row per VMEM row (H >= 128 path)."""
    xf = x_ref[...].astype(jnp.float32)                       # (T, H)
    mean_sq = jnp.mean(xf * xf, axis=-1, keepdims=True)       # (T, 1)
    scale = lax.rsqrt(mean_sq + eps)                          # EUP slot
    o_ref[...] = (xf * scale * w_ref[...].astype(jnp.float32)).astype(o_ref.dtype)


def rmsnorm_packed_kernel(x_ref, w_ref, seg_ref, segt_ref, o_ref, *, eps, h):
    """Lane-dense small-H path: `pack` logical rows of width h per super-row.

    seg (P, pack) / seg_t (pack, P) are 0/1 segment-indicator matrices held
    resident in VMEM; two tiny MXU matmuls do the per-logical-row reduction
    and the broadcast back, so no cross-lane reshape is needed.
    """
    xf = x_ref[...].astype(jnp.float32)                       # (T, P)
    xx = xf * xf
    sum_sq = jnp.dot(xx, seg_ref[...], preferred_element_type=jnp.float32,
                     precision=lax.Precision.HIGHEST)         # (T, pack)
    scale = lax.rsqrt(sum_sq * (1.0 / h) + eps)               # (T, pack)
    scale_full = jnp.dot(scale, segt_ref[...], preferred_element_type=jnp.float32,
                         precision=lax.Precision.HIGHEST)     # (T, P)
    o_ref[...] = (xf * scale_full * w_ref[...].astype(jnp.float32)).astype(o_ref.dtype)


def _round_up(x, m):
    return (x + m - 1) // m * m


def _vmem_capacity_bytes():
    try:
        return int(pltpu.get_tpu_info().vmem_capacity_bytes)
    except Exception:
        return 64 << 20          # conservative per-core default (v7x)


def rms_norm(x, weight, epsilon, *, row_tile=None, vmem_budget_bytes=None,
             target_block_bytes=None):
    """x: [..., H] (any leading dims), weight: [H]. Returns same shape/dtype as x."""
    orig_shape = x.shape
    h = orig_shape[-1]
    x2d = x.reshape(-1, h)
    rows = x2d.shape[0]

    # Lane-dense packing for small H: fold `pack` logical rows into each
    # lcm(H,128)-wide super-row so output stores are unmasked full-lane vst.
    pack = 1
    if h < 128:
        p_h_cand = math.lcm(h, 128)
        cand_pack = p_h_cand // h
        if p_h_cand <= 512 and rows % cand_pack == 0:
            pack = cand_pack
    # TODO(synk): rows not divisible by pack (or lcm(H,128) > 512) falls back
    # to masked narrow-lane stores instead of padding a handful of rows.

    if pack > 1:
        p_h = pack * h
        x2d = x2d.reshape(rows // pack, p_h)
        w_row = jnp.tile(weight, pack).reshape(1, p_h)
        grp = jnp.arange(p_h, dtype=jnp.int32) // h
        seg = (grp[:, None] == jnp.arange(pack, dtype=jnp.int32)[None, :]
               ).astype(jnp.float32)                          # (P, pack)
        seg_t = (grp[None, :] == jnp.arange(pack, dtype=jnp.int32)[:, None]
                 ).astype(jnp.float32)                        # (pack, P)
    else:
        w_row = weight.reshape(1, h)
        seg = seg_t = None

    p_rows, p_h = x2d.shape
    itemsize = x2d.dtype.itemsize

    # Generation-aware budgets: ~3/4 of reported VMEM (96 MiB v5e/v6e, 48 MiB
    # v7x); bigger per-block byte target on v7x, where faster HBM makes the
    # fixed ~0.35us/step overhead loom larger.
    vmem_cap = _vmem_capacity_bytes()
    if vmem_budget_bytes is None:
        vmem_budget_bytes = (vmem_cap * 3) // 4
    if target_block_bytes is None:
        target_block_bytes = (6 << 20) if vmem_cap <= (64 << 20) else (4 << 20)

    # Working set / row ~= 2x in + 2x out (double-buffered, input dtype)
    #                      + ~2 f32 full-block temporaries in the kernel.
    per_row_bytes = p_h * (4 * itemsize + 2 * 4)
    max_tile = max(16, (vmem_budget_bytes // per_row_bytes) // 16 * 16)

    if row_tile is None:
        tile = max(16, (target_block_bytes // (p_h * itemsize)) // 16 * 16)
    else:
        tile = max(8, _round_up(int(row_tile), 8))
    tile = min(tile, max_tile)

    if tile >= p_rows:
        if p_rows >= 32:
            # Keep >=2 grid steps so "parallel" can shard rows across v7x's
            # two TensorCores (one extra ~0.35us step on single-TC chips).
            tile = _round_up(pl.cdiv(p_rows, 2), 16)
        else:
            tile = p_rows                     # tiny input: single full block

    grid = pl.cdiv(p_rows, tile)              # ragged tail -> masked last block

    x_spec = pl.BlockSpec((tile, p_h), lambda i: (i, 0))
    w_spec = pl.BlockSpec((1, p_h), lambda i: (0, 0))        # resident weight row
    out_spec = pl.BlockSpec((tile, p_h), lambda i: (i, 0))

    if pack > 1:
        kernel = functools.partial(rmsnorm_packed_kernel, eps=float(epsilon), h=h)
        in_specs = [x_spec, w_spec,
                    pl.BlockSpec((p_h, pack), lambda i: (0, 0)),   # resident seg
                    pl.BlockSpec((pack, p_h), lambda i: (0, 0))]   # resident seg_t
        args = (x2d, w_row, seg, seg_t)
    else:
        kernel = functools.partial(rmsnorm_kernel, eps=float(epsilon))
        in_specs = [x_spec, w_spec]
        args = (x2d, w_row)

    out = pl.pallas_call(
        kernel,
        out_shape=jax.ShapeDtypeStruct((p_rows, p_h), x.dtype),
        grid_spec=pltpu.PrefetchScalarGridSpec(
            num_scalar_prefetch=0,
            grid=(grid,),
            in_specs=in_specs,
            out_specs=out_spec,
        ),
        compiler_params=pltpu.CompilerParams(
            dimension_semantics=("parallel",),      # megacore sharding on v7x
            vmem_limit_bytes=int(vmem_budget_bytes),
        ),
    )(*args)

    return out.reshape(orig_shape)


if __name__ == "__main__":
    EPS = 1e-5

    def ref_rmsnorm(x, w, eps):
        xf = x.astype(jnp.float32)
        norm = jnp.sqrt(jnp.mean(xf * xf, axis=-1, keepdims=True) + eps)
        return (w.astype(jnp.float32) * xf / norm).astype(x.dtype)

    key = jax.random.PRNGKey(0)
    k1, k2, k3, k4 = jax.random.split(key, 4)

    # Case 1: module config (mc.h = 32), batch=2, seq=8, bf16 activations,
    # weight = ones — lane-dense packed path (pack=4), single tiny block.
    B, S, H = 2, 8, 32
    x1 = jax.random.normal(k1, (B, S, H), dtype=jnp.float32).astype(jnp.bfloat16)
    w1 = jnp.ones((H,), dtype=jnp.bfloat16)
    y1 = jax.block_until_ready(rms_norm(x1, w1, EPS))
    r1 = ref_rmsnorm(x1, w1, EPS)
    assert y1.shape == x1.shape and y1.dtype == x1.dtype
    assert jnp.allclose(y1.astype(jnp.float32), r1.astype(jnp.float32),
                        atol=2e-2, rtol=2e-2)

    # Case 2: H >= 128 path with a ragged row count (40 rows) -> masked last
    # block; default tiling gives a 2-step parallel grid, row_tile=16 a 3-step
    # grid.  Non-trivial weight.
    B2, S2, H2 = 2, 20, 256
    x2 = jax.random.normal(k2, (B2, S2, H2), dtype=jnp.float32).astype(jnp.bfloat16)
    w2 = (1.0 + 0.1 * jax.random.normal(k3, (H2,), dtype=jnp.float32)).astype(jnp.bfloat16)
    r2 = ref_rmsnorm(x2, w2, EPS)
    for rt in (None, 16):
        y2 = jax.block_until_ready(rms_norm(x2, w2, EPS, row_tile=rt))
        assert y2.shape == x2.shape and y2.dtype == x2.dtype
        assert jnp.allclose(y2.astype(jnp.float32), r2.astype(jnp.float32),
                            atol=2e-2, rtol=2e-2)

    # Case 3: small H that does NOT divide 128 (H=96 -> 384-lane super-rows,
    # pack=4), float32 activations.
    B3, S3, H3 = 3, 8, 96
    x3 = jax.random.normal(k4, (B3, S3, H3), dtype=jnp.float32)
    w3 = jnp.ones((H3,), dtype=jnp.float32)
    y3 = jax.block_until_ready(rms_norm(x3, w3, EPS))
    r3 = ref_rmsnorm(x3, w3, EPS)
    assert y3.shape == x3.shape and y3.dtype == x3.dtype
    assert jnp.allclose(y3, r3, atol=1e-4, rtol=1e-4)

    print("KERNEL_OK")
</pallas_src>

<mosaic_0001>
module attributes {stable_mosaic.version = 11 : i64} {
  func.func @rmsnorm_packed_kernel(%arg0: i32, %arg1: memref<4x128xbf16, #tpu.memory_space<vmem>>, %arg2: memref<1x128xbf16, #tpu.memory_space<vmem>>, %arg3: memref<128x4xf32, #tpu.memory_space<vmem>>, %arg4: memref<4x128xf32, #tpu.memory_space<vmem>>, %arg5: memref<4x128xbf16, #tpu.memory_space<vmem>>) attributes {dimension_semantics = [#tpu.dimension_semantics<parallel>], iteration_bounds = array<i64: 1>, scalar_prefetch = 0 : i64, scratch_operands = 0 : i64, tpu.core_type = #tpu.core_type<tc>, window_params = [{transform_indices = @transform_0, window_bounds = array<i64: 4, 128>}, {pipeline_mode = #tpu.pipeline_mode<synchronous>, transform_indices = @transform_1, window_bounds = array<i64: 1, 128>}, {pipeline_mode = #tpu.pipeline_mode<synchronous>, transform_indices = @transform_2, window_bounds = array<i64: 128, 4>}, {pipeline_mode = #tpu.pipeline_mode<synchronous>, transform_indices = @transform_3, window_bounds = array<i64: 4, 128>}, {transform_indices = @transform_4, window_bounds = array<i64: 4, 128>}]} {
    %c0 = arith.constant 0 : index
    %c0_0 = arith.constant 0 : index
    %0 = vector.load %arg1[%c0, %c0_0] : memref<4x128xbf16, #tpu.memory_space<vmem>>, vector<4x128xbf16>
    %1 = arith.extf %0 : vector<4x128xbf16> to vector<4x128xf32>
    %2 = arith.mulf %1, %1 : vector<4x128xf32>
    %c0_1 = arith.constant 0 : index
    %c0_2 = arith.constant 0 : index
    %3 = vector.load %arg3[%c0_1, %c0_2] : memref<128x4xf32, #tpu.memory_space<vmem>>, vector<128x4xf32>
    %cst = arith.constant dense<0.000000e+00> : vector<4x4xf32>
    %4 = tpu.matmul %2, %3, %cst {dimension_numbers = #tpu.dot_dimension_numbers<[1], [0], [0], [1], [0, 0, 1, 1], [], []>, precision = #tpu.contract_precision<fp32>} : vector<4x128xf32>, vector<128x4xf32>, vector<4x4xf32> -> vector<4x4xf32>
    %cst_3 = arith.constant 3.125000e-02 : f32
    %5 = vector.broadcast %cst_3 : f32 to vector<4x4xf32>
    %6 = arith.mulf %4, %5 : vector<4x4xf32>
    %cst_4 = arith.constant 9.99999974E-6 : f32
    %7 = vector.broadcast %cst_4 : f32 to vector<4x4xf32>
    %8 = arith.addf %6, %7 : vector<4x4xf32>
    %9 = math.rsqrt %8 : vector<4x4xf32>
    %c0_5 = arith.constant 0 : index
    %c0_6 = arith.constant 0 : index
    %10 = vector.load %arg4[%c0_5, %c0_6] : memref<4x128xf32, #tpu.memory_space<vmem>>, vector<4x128xf32>
    %cst_7 = arith.constant dense<0.000000e+00> : vector<4x128xf32>
    %11 = tpu.matmul %9, %10, %cst_7 {dimension_numbers = #tpu.dot_dimension_numbers<[1], [0], [0], [1], [0, 0, 1, 1], [], []>, precision = #tpu.contract_precision<fp32>} : vector<4x4xf32>, vector<4x128xf32>, vector<4x128xf32> -> vector<4x128xf32>
    %12 = arith.mulf %1, %11 : vector<4x128xf32>
    %c0_8 = arith.constant 0 : index
    %c0_9 = arith.constant 0 : index
    %13 = vector.load %arg2[%c0_8, %c0_9] : memref<1x128xbf16, #tpu.memory_space<vmem>>, vector<1x128xbf16>
    %14 = arith.extf %13 : vector<1x128xbf16> to vector<1x128xf32>
    %15 = vector.broadcast %14 : vector<1x128xf32> to vector<4x128xf32>
    %16 = arith.mulf %12, %15 : vector<4x128xf32>
    %17 = arith.truncf %16 : vector<4x128xf32> to vector<4x128xbf16>
    %c0_10 = arith.constant 0 : index
    %c0_11 = arith.constant 0 : index
    %18 = vector.load %arg5[%c0_10, %c0_11] : memref<4x128xbf16, #tpu.memory_space<vmem>>, vector<4x128xbf16>
    tpu.vector_store %arg5[%c0_10, %c0_11], %17 {strides = array<i32>} : memref<4x128xbf16, #tpu.memory_space<vmem>>, vector<4x128xbf16>,
    return
  }
  func.func @transform_0(%arg0: i32) -> (i32, i32) {
    %c0_i32 = arith.constant 0 : i32
    %c0_i32_0 = arith.constant 0 : i32
    return %arg0, %c0_i32 : i32, i32
  }
  func.func @transform_1(%arg0: i32) -> (i32, i32) {
    %c0_i32 = arith.constant 0 : i32
    %c0_i32_0 = arith.constant 0 : i32
    %c0_i32_1 = arith.constant 0 : i32
    return %c0_i32, %c0_i32_0 : i32, i32
  }
  func.func @transform_2(%arg0: i32) -> (i32, i32) {
    %c0_i32 = arith.constant 0 : i32
    %c0_i32_0 = arith.constant 0 : i32
    %c0_i32_1 = arith.constant 0 : i32
    return %c0_i32, %c0_i32_0 : i32, i32
  }
  func.func @transform_3(%arg0: i32) -> (i32, i32) {
    %c0_i32 = arith.constant 0 : i32
    %c0_i32_0 = arith.constant 0 : i32
    %c0_i32_1 = arith.constant 0 : i32
    return %c0_i32, %c0_i32_0 : i32, i32
  }
  func.func @transform_4(%arg0: i32) -> (i32, i32) {
    %c0_i32 = arith.constant 0 : i32
    %c0_i32_0 = arith.constant 0 : i32
    return %arg0, %c0_i32 : i32, i32
  }
}

</mosaic_0001>

<llo_original>
// kernel: tpu_custom_call.1
$region0: #{tpu_custom_call.1}
  #allocation0 [shape = 'u32[]', space=smem, size = 0x4, offset = 0x4, fixed_abs, tag = 'smem constant byte address 0x4 - core index']
  #allocation1 [shape = 'u32[144,128]{1,0:T(1,128)}', space=vmem, size = 0x12000, scoped, tag = 'internal scratch']
  %s0 = inlined_call_operand.vmem [shape: bf16[4,128], index: 0, kind: input, shape index: {}]
  %s1 = inlined_call_operand.vmem [shape: bf16[1,128], index: 1, kind: input, shape index: {}]
  %s2 = inlined_call_operand.vmem [shape: f32[128,4], index: 2, kind: input, shape index: {}]
  %s3 = inlined_call_operand.vmem [shape: f32[4,128], index: 3, kind: input, shape index: {}]
  %s4 = inlined_call_operand.hbm [shape: bf16[4,128], index: 4, kind: output, shape index: {}]
  %s5 = sld [smem:[#allocation0]]
  $region26: #{tpu_custom_call.1} parent=0
    _
  %s7 = ssub.s32 1, %s5
  %s8 = scalar_select 0, %s7, %s5
  $region1: #{tpu_custom_call.1} parent=0
    #allocation2 [shape = 'u8[1024]{0}', space=vmem, size = 0x400, scoped, tag = 'output window, operand 0, single buffered']
    #allocation3 [shape = 's32[1]{0}', space=sflag, size = 0x4, scoped, tag = 'scoped memory for tpu_custom_call.1']
    %9 = vsyncpa [#allocation3], 0
    // Predicated region
    $region2: #{tpu_custom_call.1} parent=1 // pred_check
      _
    $region3: #{tpu_custom_call.1} parent=1 // pred_check_branch
      %11 = sbr.rel (0) target = $region5
    $region4: #{tpu_custom_call.1} parent=1 // pred_region
      _
    $region5: #{tpu_custom_call.1} parent=1 // pred_fallthru
      _
    // Predicated region
    $region6: #{tpu_custom_call.1} parent=1 // pred_check
      _
    $region7: #{tpu_custom_call.1} parent=1 // pred_check_branch
      %13 = sbr.rel (0) target = $region9
    $region8: #{tpu_custom_call.1} parent=1 // pred_region
      _
    $region9: #{tpu_custom_call.1} parent=1 // pred_fallthru
      _
    // Predicated region
    $region10: #{tpu_custom_call.1} parent=1 // pred_check
      _
    $region11: #{tpu_custom_call.1} parent=1 // pred_check_branch
      %15 = sbr.rel (0) target = $region13
    $region12: #{tpu_custom_call.1} parent=1 // pred_region
      _
    $region13: #{tpu_custom_call.1} parent=1 // pred_fallthru
      _
    // Predicated region
    $region14: #{tpu_custom_call.1} parent=1 // pred_check
      _
    $region15: #{tpu_custom_call.1} parent=1 // pred_check_branch
      %17 = sbr.rel (0) target = $region17
    $region16: #{tpu_custom_call.1} parent=1 // pred_region
      _
    $region17: #{tpu_custom_call.1} parent=1 // pred_fallthru
      _
    %v18 = vld [vmem:[%s0] sm:$0x3]
    %v19 = vunpack.c.l.bf16 %v18
    %v20 = vmul.f32 %v19, %v19
    %v21 = vld [vmem:[%s2] sm:$0xff]
    %v22 = vld [vmem:[%s2 + $0x8] sm:$0xff]
    %v23 = vld [vmem:[%s2 + $0x10] sm:$0xff]
    %v24 = vld [vmem:[%s2 + $0x18] sm:$0xff]
    %v25 = vld [vmem:[%s2 + $0x20] sm:$0xff]
    %v26 = vld [vmem:[%s2 + $0x28] sm:$0xff]
    %v27 = vld [vmem:[%s2 + $0x30] sm:$0xff]
    %v28 = vld [vmem:[%s2 + $0x38] sm:$0xff]
    %v29 = vld [vmem:[%s2 + $0x40] sm:$0xff]
    %v30 = vld [vmem:[%s2 + $0x48] sm:$0xff]
    %v31 = vld [vmem:[%s2 + $0x50] sm:$0xff]
    %v32 = vld [vmem:[%s2 + $0x58] sm:$0xff]
    %v33 = vld [vmem:[%s2 + $0x60] sm:$0xff]
    %v34 = vld [vmem:[%s2 + $0x68] sm:$0xff]
    %v35 = vld [vmem:[%s2 + $0x70] sm:$0xff]
    %v36 = vld [vmem:[%s2 + $0x78] sm:$0xff]
    %37 = vmatprep.subr.mxu0 0.0
    %v38 = vand.u32 %v21, 4294901760
    %39 = vmatpush1.msra.mxu0 %v38
    %40 = vmatprep.subr.mxu0 0.0
    %v41 = vand.u32 %v22, 4294901760
    %42 = vmatpush1.msra.mxu0 %v41
    %43 = vmatprep.subr.mxu0 0.0
    %v44 = vand.u32 %v23, 4294901760
    %45 = vmatpush1.msra.mxu0 %v44
    %46 = vmatprep.subr.mxu0 0.0
    %v47 = vand.u32 %v24, 4294901760
    %48 = vmatpush1.msra.mxu0 %v47
    %49 = vmatprep.subr.mxu0 0.0
    %v50 = vand.u32 %v25, 4294901760
    %51 = vmatpush1.msra.mxu0 %v50
    %52 = vmatprep.subr.mxu0 0.0
    %v53 = vand.u32 %v26, 4294901760
    %54 = vmatpush1.msra.mxu0 %v53
    %55 = vmatprep.subr.mxu0 0.0
    %v56 = vand.u32 %v27, 4294901760
    %57 = vmatpush1.msra.mxu0 %v56
    %58 = vmatprep.subr.mxu0 0.0
    %v59 = vand.u32 %v28, 4294901760
    %60 = vmatpush1.msra.mxu0 %v59
    %61 = vmatprep.subr.mxu0 0.0
    %v62 = vand.u32 %v29, 4294901760
    %63 = vmatpush1.msra.mxu0 %v62
    %64 = vmatprep.subr.mxu0 0.0
    %v65 = vand.u32 %v30, 4294901760
    %66 = vmatpush1.msra.mxu0 %v65
    %67 = vmatprep.subr.mxu0 0.0
    %v68 = vand.u32 %v31, 4294901760
    %69 = vmatpush1.msra.mxu0 %v68
    %70 = vmatprep.subr.mxu0 0.0
    %v71 = vand.u32 %v32, 4294901760
    %72 = vmatpush1.msra.mxu0 %v71
    %73 = vmatprep.subr.mxu0 0.0
    %v74 = vand.u32 %v33, 4294901760
    %75 = vmatpush1.msra.mxu0 %v74
    %76 = vmatprep.subr.mxu0 0.0
    %v77 = vand.u32 %v34, 4294901760
    %78 = vmatpush1.msra.mxu0 %v77
    %79 = vmatprep.subr.mxu0 0.0
    %v80 = vand.u32 %v35, 4294901760
    %81 = vmatpush1.msra.mxu0 %v80
    %82 = vmatprep.subr.mxu0 0.0
    %v83 = vand.u32 %v36, 4294901760
    %84 = vmatpush1.msra.mxu0 %v83
    %85 = vmatprep.subr.mxu0 0.0
    %86 = vmatpush1.msra.mxu0 0.0
    %87 = vmatprep.subr.mxu0 0.0
    %88 = vmatpush1.msra.mxu0 0.0
    %89 = vmatprep.subr.mxu0 0.0
    %90 = vmatpush1.msra.mxu0 0.0
    %91 = vmatprep.subr.mxu0 0.0
    %92 = vmatpush1.msra.mxu0 0.0
    %93 = vmatprep.subr.mxu0 0.0
    %94 = vmatpush1.msra.mxu0 0.0
    %95 = vmatprep.subr.mxu0 0.0
    %96 = vmatpush1.msra.mxu0 0.0
    %97 = vmatprep.subr.mxu0 0.0
    %98 = vmatpush1.msra.mxu0 0.0
    %99 = vmatprep.subr.mxu0 0.0
    %100 = vmatpush1.msra.mxu0 0.0
    %101 = vmatprep.subr.mxu0 0.0
    %102 = vmatpush1.msra.mxu0 0.0
    %103 = vmatprep.subr.mxu0 0.0
    %104 = vmatpush1.msra.mxu0 0.0
    %105 = vmatprep.subr.mxu0 0.0
    %106 = vmatpush1.msra.mxu0 0.0
    %107 = vmatprep.subr.mxu0 0.0
    %108 = vmatpush1.msra.mxu0 0.0
    %109 = vmatprep.subr.mxu0 0.0
    %110 = vmatpush1.msra.mxu0 0.0
    %111 = vmatprep.subr.mxu0 0.0
    %112 = vmatpush1.msra.mxu0 0.0
    %113 = vmatprep.subr.mxu0 0.0
    %114 = vmatpush1.msra.mxu0 0.0
    %115 = vmatprep.subr.mxu0 0.0
    %116 = vmatpush1.msra.mxu0 0.0
    %117 = vmatprep.mubr.f32.mxu0 0.0
    %v118 = vand.u32 %v20, 4294901760
    %v119 = vsub.f32 %v20, %v118
    %v120 = vand.u32 %v119, 4294901760
    %v121 = vsub.f32 %v119, %v120
    %v122 = vand.u32 %v121, 4294901760
    %123 = vmatmul.mubr.f32.gmra.mrb[0].mxu0 %v122
    %v124 = vpop.f32.mrb[0].mxu0
    %v125 = vadd.f32 0.0, %v124
    %v126 = vpop.f32.mrb[0].mxu0
    %127 = vdwg.mxu0
    %128 = vmatprep.subr.mxu0 0.0
    %v129 = vand.u32 %v21, 4294901760
    %v130 = vsub.f32 %v21, %v129
    %v131 = vand.u32 %v130, 4294901760
    %v132 = vsub.f32 %v130, %v131
    %v133 = vand.u32 %v132, 4294901760
    %134 = vmatpush1.msra.mxu0 %v133
    %135 = vmatprep.subr.mxu0 0.0
    %v136 = vand.u32 %v22, 4294901760
    %v137 = vsub.f32 %v22, %v136
    %v138 = vand.u32 %v137, 4294901760
    %v139 = vsub.f32 %v137, %v138
    %v140 = vand.u32 %v139, 4294901760
    %141 = vmatpush1.msra.mxu0 %v140
    %142 = vmatprep.subr.mxu0 0.0
    %v143 = vand.u32 %v23, 4294901760
    %v144 = vsub.f32 %v23, %v143
    %v145 = vand.u32 %v144, 4294901760
    %v146 = vsub.f32 %v144, %v145
    %v147 = vand.u32 %v146, 4294901760
    %148 = vmatpush1.msra.mxu0 %v147
    %149 = vmatprep.subr.mxu0 0.0
    %v150 = vand.u32 %v24, 4294901760
    %v151 = vsub.f32 %v24, %v150
    %v152 = vand.u32 %v151, 4294901760
    %v153 = vsub.f32 %v151, %v152
    %v154 = vand.u32 %v153, 4294901760
    %155 = vmatpush1.msra.mxu0 %v154
    %156 = vmatprep.subr.mxu0 0.0
    %v157 = vand.u32 %v25, 4294901760
    %v158 = vsub.f32 %v25, %v157
    %v159 = vand.u32 %v158, 4294901760
    %v160 = vsub.f32 %v158, %v159
    %v161 = vand.u32 %v160, 4294901760
    %162 = vmatpush1.msra.mxu0 %v161
    %163 = vmatprep.subr.mxu0 0.0
    %v164 = vand.u32 %v26, 4294901760
    %v165 = vsub.f32 %v26, %v164
    %v166 = vand.u32 %v165, 4294901760
    %v167 = vsub.f32 %v165, %v166
    %v168 = vand.u32 %v167, 4294901760
    %169 = vmatpush1.msra.mxu0 %v168
    %170 = vmatprep.subr.mxu0 0.0
    %v171 = vand.u32 %v27, 4294901760
    %v172 = vsub.f32 %v27, %v171
    %v173 = vand.u32 %v172, 4294901760
    %v174 = vsub.f32 %v172, %v173
    %v175 = vand.u32 %v174, 4294901760
    %176 = vmatpush1.msra.mxu0 %v175
    %177 = vmatprep.subr.mxu0 0.0
    %v178 = vand.u32 %v28, 4294901760
    %v179 = vsub.f32 %v28, %v178
    %v180 = vand.u32 %v179, 4294901760
    %v181 = vsub.f32 %v179, %v180
    %v182 = vand.u32 %v181, 4294901760
    %183 = vmatpush1.msra.mxu0 %v182
    %184 = vmatprep.subr.mxu0 0.0
    %v185 = vand.u32 %v29, 4294901760
    %v186 = vsub.f32 %v29, %v185
    %v187 = vand.u32 %v186, 4294901760
    %v188 = vsub.f32 %v186, %v187
    %v189 = vand.u32 %v188, 4294901760
    %190 = vmatpush1.msra.mxu0 %v189
    %191 = vmatprep.subr.mxu0 0.0
    %v192 = vand.u32 %v30, 4294901760
    %v193 = vsub.f32 %v30, %v192
    %v194 = vand.u32 %v193, 4294901760
    %v195 = vsub.f32 %v193, %v194
    %v196 = vand.u32 %v195, 4294901760
    %197 = vmatpush1.msra.mxu0 %v196
    %198 = vmatprep.subr.mxu0 0.0
    %v199 = vand.u32 %v31, 4294901760
    %v200 = vsub.f32 %v31, %v199
    %v201 = vand.u32 %v200, 4294901760
    %v202 = vsub.f32 %v200, %v201
    %v203 = vand.u32 %v202, 4294901760
    %204 = vmatpush1.msra.mxu0 %v203
    %205 = vmatprep.subr.mxu0 0.0
    %v206 = vand.u32 %v32, 4294901760
    %v207 = vsub.f32 %v32, %v206
    %v208 = vand.u32 %v207, 4294901760
    %v209 = vsub.f32 %v207, %v208
    %v210 = vand.u32 %v209, 4294901760
    %211 = vmatpush1.msra.mxu0 %v210
    %212 = vmatprep.subr.mxu0 0.0
    %v213 = vand.u32 %v33, 4294901760
    %v214 = vsub.f32 %v33, %v213
    %v215 = vand.u32 %v214, 4294901760
    %v216 = vsub.f32 %v214, %v215
    %v217 = vand.u32 %v216, 4294901760
    %218 = vmatpush1.msra.mxu0 %v217
    %219 = vmatprep.subr.mxu0 0.0
    %v220 = vand.u32 %v34, 4294901760
    %v221 = vsub.f32 %v34, %v220
    %v222 = vand.u32 %v221, 4294901760
    %v223 = vsub.f32 %v221, %v222
    %v224 = vand.u32 %v223, 4294901760
    %225 = vmatpush1.msra.mxu0 %v224
    %226 = vmatprep.subr.mxu0 0.0
    %v227 = vand.u32 %v35, 4294901760
    %v228 = vsub.f32 %v35, %v227
    %v229 = vand.u32 %v228, 4294901760
    %v230 = vsub.f32 %v228, %v229
    %v231 = vand.u32 %v230, 4294901760
    %232 = vmatpush1.msra.mxu0 %v231
    %233 = vmatprep.subr.mxu0 0.0
    %v234 = vand.u32 %v36, 4294901760
    %v235 = vsub.f32 %v36, %v234
    %v236 = vand.u32 %v235, 4294901760
    %v237 = vsub.f32 %v235, %v236
    %v238 = vand.u32 %v237, 4294901760
    %239 = vmatpush1.msra.mxu0 %v238
    %240 = vmatprep.subr.mxu0 0.0
    %241 = vmatpush1.msra.mxu0 0.0
    %242 = vmatprep.subr.mxu0 0.0
    %243 = vmatpush1.msra.mxu0 0.0
    %244 = vmatprep.subr.mxu0 0.0
    %245 = vmatpush1.msra.mxu0 0.0
    %246 = vmatprep.subr.mxu0 0.0
    %247 = vmatpush1.msra.mxu0 0.0
    %248 = vmatprep.subr.mxu0 0.0
    %249 = vmatpush1.msra.mxu0 0.0
    %250 = vmatprep.subr.mxu0 0.0
    %251 = vmatpush1.msra.mxu0 0.0
    %252 = vmatprep.subr.mxu0 0.0
    %253 = vmatpush1.msra.mxu0 0.0
    %254 = vmatprep.subr.mxu0 0.0
    %255 = vmatpush1.msra.mxu0 0.0
    %256 = vmatprep.subr.mxu0 0.0
    %257 = vmatpush1.msra.mxu0 0.0
    %258 = vmatprep.subr.mxu0 0.0
    %259 = vmatpush1.msra.mxu0 0.0
    %260 = vmatprep.subr.mxu0 0.0
    %261 = vmatpush1.msra.mxu0 0.0
    %262 = vmatprep.subr.mxu0 0.0
    %263 = vmatpush1.msra.mxu0 0.0
    %264 = vmatprep.subr.mxu0 0.0
    %265 = vmatpush1.msra.mxu0 0.0
    %266 = vmatprep.subr.mxu0 0.0
    %267 = vmatpush1.msra.mxu0 0.0
    %268 = vmatprep.subr.mxu0 0.0
    %269 = vmatpush1.msra.mxu0 0.0
    %270 = vmatprep.subr.mxu0 0.0
    %271 = vmatpush1.msra.mxu0 0.0
    %272 = vmatprep.mubr.f32.mxu0 0.0
    %v273 = vand.u32 %v20, 4294901760
    %274 = vmatmul.mubr.f32.gmra.mrb[0].mxu0 %v273
    %v275 = vpop.f32.mrb[0].mxu0
    %v276 = vadd.f32 %v125, %v275
    %v277 = vpop.f32.mrb[0].mxu0
    %278 = vdwg.mxu0
    %279 = vmatprep.subr.mxu0 0.0
    %v280 = vand.u32 %v21, 4294901760
    %v281 = vsub.f32 %v21, %v280
    %282 = vmatpush1.msra.mxu0 %v281
    %283 = vmatprep.subr.mxu0 0.0
    %v284 = vand.u32 %v22, 4294901760
    %v285 = vsub.f32 %v22, %v284
    %286 = vmatpush1.msra.mxu0 %v285
    %287 = vmatprep.subr.mxu0 0.0
    %v288 = vand.u32 %v23, 4294901760
    %v289 = vsub.f32 %v23, %v288
    %290 = vmatpush1.msra.mxu0 %v289
    %291 = vmatprep.subr.mxu0 0.0
    %v292 = vand.u32 %v24, 4294901760
    %v293 = vsub.f32 %v24, %v292
    %294 = vmatpush1.msra.mxu0 %v293
    %295 = vmatprep.subr.mxu0 0.0
    %v296 = vand.u32 %v25, 4294901760
    %v297 = vsub.f32 %v25, %v296
    %298 = vmatpush1.msra.mxu0 %v297
    %299 = vmatprep.subr.mxu0 0.0
    %v300 = vand.u32 %v26, 4294901760
    %v301 = vsub.f32 %v26, %v300
    %302 = vmatpush1.msra.mxu0 %v301
    %303 = vmatprep.subr.mxu0 0.0
    %v304 = vand.u32 %v27, 4294901760
    %v305 = vsub.f32 %v27, %v304
    %306 = vmatpush1.msra.mxu0 %v305
    %307 = vmatprep.subr.mxu0 0.0
    %v308 = vand.u32 %v28, 4294901760
    %v309 = vsub.f32 %v28, %v308
    %310 = vmatpush1.msra.mxu0 %v309
    %311 = vmatprep.subr.mxu0 0.0
    %v312 = vand.u32 %v29, 4294901760
    %v313 = vsub.f32 %v29, %v312
    %314 = vmatpush1.msra.mxu0 %v313
    %315 = vmatprep.subr.mxu0 0.0
    %v316 = vand.u32 %v30, 4294901760
    %v317 = vsub.f32 %v30, %v316
    %318 = vmatpush1.msra.mxu0 %v317
    %319 = vmatprep.subr.mxu0 0.0
    %v320 = vand.u32 %v31, 4294901760
    %v321 = vsub.f32 %v31, %v320
    %322 = vmatpush1.msra.mxu0 %v321
    %323 = vmatprep.subr.mxu0 0.0
    %v324 = vand.u32 %v32, 4294901760
    %v325 = vsub.f32 %v32, %v324
    %326 = vmatpush1.msra.mxu0 %v325
    %327 = vmatprep.subr.mxu0 0.0
    %v328 = vand.u32 %v33, 4294901760
    %v329 = vsub.f32 %v33, %v328
    %330 = vmatpush1.msra.mxu0 %v329
    %331 = vmatprep.subr.mxu0 0.0
    %v332 = vand.u32 %v34, 4294901760
    %v333 = vsub.f32 %v34, %v332
    %334 = vmatpush1.msra.mxu0 %v333
    %335 = vmatprep.subr.mxu0 0.0
    %v336 = vand.u32 %v35, 4294901760
    %v337 = vsub.f32 %v35, %v336
    %338 = vmatpush1.msra.mxu0 %v337
    %339 = vmatprep.subr.mxu0 0.0
    %v340 = vand.u32 %v36, 4294901760
    %v341 = vsub.f32 %v36, %v340
    %342 = vmatpush1.msra.mxu0 %v341
    %343 = vmatprep.subr.mxu0 0.0
    %344 = vmatpush1.msra.mxu0 0.0
    %345 = vmatprep.subr.mxu0 0.0
    %346 = vmatpush1.msra.mxu0 0.0
    %347 = vmatprep.subr.mxu0 0.0
    %348 = vmatpush1.msra.mxu0 0.0
    %349 = vmatprep.subr.mxu0 0.0
    %350 = vmatpush1.msra.mxu0 0.0
    %351 = vmatprep.subr.mxu0 0.0
    %352 = vmatpush1.msra.mxu0 0.0
    %353 = vmatprep.subr.mxu0 0.0
    %354 = vmatpush1.msra.mxu0 0.0
    %355 = vmatprep.subr.mxu0 0.0
    %356 = vmatpush1.msra.mxu0 0.0
    %357 = vmatprep.subr.mxu0 0.0
    %358 = vmatpush1.msra.mxu0 0.0
    %359 = vmatprep.subr.mxu0 0.0
    %360 = vmatpush1.msra.mxu0 0.0
    %361 = vmatprep.subr.mxu0 0.0
    %362 = vmatpush1.msra.mxu0 0.0
    %363 = vmatprep.subr.mxu0 0.0
    %364 = vmatpush1.msra.mxu0 0.0
    %365 = vmatprep.subr.mxu0 0.0
    %366 = vmatpush1.msra.mxu0 0.0
    %367 = vmatprep.subr.mxu0 0.0
    %368 = vmatpush1.msra.mxu0 0.0
    %369 = vmatprep.subr.mxu0 0.0
    %370 = vmatpush1.msra.mxu0 0.0
    %371 = vmatprep.subr.mxu0 0.0
    %372 = vmatpush1.msra.mxu0 0.0
    %373 = vmatprep.subr.mxu0 0.0
    %374 = vmatpush1.msra.mxu0 0.0
    %375 = vmatprep.mubr.f32.mxu0 0.0
    %v376 = vand.u32 %v20, 4294901760
    %v377 = vsub.f32 %v20, %v376
    %378 = vmatmul.mubr.f32.gmra.mrb[0].mxu0 %v377
    %v379 = vpop.f32.mrb[0].mxu0
    %v380 = vadd.f32 %v276, %v379
    %v381 = vpop.f32.mrb[0].mxu0
    %382 = vdwg.mxu0
    %383 = vmatprep.subr.mxu0 0.0
    %v384 = vand.u32 %v21, 4294901760
    %385 = vmatpush1.msra.mxu0 %v384
    %386 = vmatprep.subr.mxu0 0.0
    %v387 = vand.u32 %v22, 4294901760
    %388 = vmatpush1.msra.mxu0 %v387
    %389 = vmatprep.subr.mxu0 0.0
    %v390 = vand.u32 %v23, 4294901760
    %391 = vmatpush1.msra.mxu0 %v390
    %392 = vmatprep.subr.mxu0 0.0
    %v393 = vand.u32 %v24, 4294901760
    %394 = vmatpush1.msra.mxu0 %v393
    %395 = vmatprep.subr.mxu0 0.0
    %v396 = vand.u32 %v25, 4294901760
    %397 = vmatpush1.msra.mxu0 %v396
    %398 = vmatprep.subr.mxu0 0.0
    %v399 = vand.u32 %v26, 4294901760
    %400 = vmatpush1.msra.mxu0 %v399
    %401 = vmatprep.subr.mxu0 0.0
    %v402 = vand.u32 %v27, 4294901760
    %403 = vmatpush1.msra.mxu0 %v402
    %404 = vmatprep.subr.mxu0 0.0
    %v405 = vand.u32 %v28, 4294901760
    %406 = vmatpush1.msra.mxu0 %v405
    %407 = vmatprep.subr.mxu0 0.0
    %v408 = vand.u32 %v29, 4294901760
    %409 = vmatpush1.msra.mxu0 %v408
    %410 = vmatprep.subr.mxu0 0.0
    %v411 = vand.u32 %v30, 4294901760
    %412 = vmatpush1.msra.mxu0 %v411
    %413 = vmatprep.subr.mxu0 0.0
    %v414 = vand.u32 %v31, 4294901760
    %415 = vmatpush1.msra.mxu0 %v414
    %416 = vmatprep.subr.mxu0 0.0
    %v417 = vand.u32 %v32, 4294901760
    %418 = vmatpush1.msra.mxu0 %v417
    %419 = vmatprep.subr.mxu0 0.0
    %v420 = vand.u32 %v33, 4294901760
    %421 = vmatpush1.msra.mxu0 %v420
    %422 = vmatprep.subr.mxu0 0.0
    %v423 = vand.u32 %v34, 4294901760
    %424 = vmatpush1.msra.mxu0 %v423
    %425 = vmatprep.subr.mxu0 0.0
    %v426 = vand.u32 %v35, 4294901760
    %427 = vmatpush1.msra.mxu0 %v426
    %428 = vmatprep.subr.mxu0 0.0
    %v429 = vand.u32 %v36, 4294901760
    %430 = vmatpush1.msra.mxu0 %v429
    %431 = vmatprep.subr.mxu0 0.0
    %432 = vmatpush1.msra.mxu0 0.0
    %433 = vmatprep.subr.mxu0 0.0
    %434 = vmatpush1.msra.mxu0 0.0
    %435 = vmatprep.subr.mxu0 0.0
    %436 = vmatpush1.msra.mxu0 0.0
    %437 = vmatprep.subr.mxu0 0.0
    %438 = vmatpush1.msra.mxu0 0.0
    %439 = vmatprep.subr.mxu0 0.0
    %440 = vmatpush1.msra.mxu0 0.0
    %441 = vmatprep.subr.mxu0 0.0
    %442 = vmatpush1.msra.mxu0 0.0
    %443 = vmatprep.subr.mxu0 0.0
    %444 = vmatpush1.msra.mxu0 0.0
    %445 = vmatprep.subr.mxu0 0.0
    %446 = vmatpush1.msra.mxu0 0.0
    %447 = vmatprep.subr.mxu0 0.0
    %448 = vmatpush1.msra.mxu0 0.0
    %449 = vmatprep.subr.mxu0 0.0
    %450 = vmatpush1.msra.mxu0 0.0
    %451 = vmatprep.subr.mxu0 0.0
    %452 = vmatpush1.msra.mxu0 0.0
    %453 = vmatprep.subr.mxu0 0.0
    %454 = vmatpush1.msra.mxu0 0.0
    %455 = vmatprep.subr.mxu0 0.0
    %456 = vmatpush1.msra.mxu0 0.0
    %457 = vmatprep.subr.mxu0 0.0
    %458 = vmatpush1.msra.mxu0 0.0
    %459 = vmatprep.subr.mxu0 0.0
    %460 = vmatpush1.msra.mxu0 0.0
    %461 = vmatprep.subr.mxu0 0.0
    %462 = vmatpush1.msra.mxu0 0.0
    %463 = vmatprep.mubr.f32.mxu0 0.0
    %v464 = vand.u32 %v20, 4294901760
    %v465 = vsub.f32 %v20, %v464
    %v466 = vand.u32 %v465, 4294901760
    %467 = vmatmul.mubr.f32.gmra.mrb[0].mxu0 %v466
    %v468 = vpop.f32.mrb[0].mxu0
    %v469 = vadd.f32 %v380, %v468
    %v470 = vpop.f32.mrb[0].mxu0
    %471 = vdwg.mxu0
    %472 = vmatprep.subr.mxu0 0.0
    %v473 = vand.u32 %v21, 4294901760
    %v474 = vsub.f32 %v21, %v473
    %v475 = vand.u32 %v474, 4294901760
    %476 = vmatpush1.msra.mxu0 %v475
    %477 = vmatprep.subr.mxu0 0.0
    %v478 = vand.u32 %v22, 4294901760
    %v479 = vsub.f32 %v22, %v478
    %v480 = vand.u32 %v479, 4294901760
    %481 = vmatpush1.msra.mxu0 %v480
    %482 = vmatprep.subr.mxu0 0.0
    %v483 = vand.u32 %v23, 4294901760
    %v484 = vsub.f32 %v23, %v483
    %v485 = vand.u32 %v484, 4294901760
    %486 = vmatpush1.msra.mxu0 %v485
    %487 = vmatprep.subr.mxu0 0.0
    %v488 = vand.u32 %v24, 4294901760
    %v489 = vsub.f32 %v24, %v488
    %v490 = vand.u32 %v489, 4294901760
    %491 = vmatpush1.msra.mxu0 %v490
    %492 = vmatprep.subr.mxu0 0.0
    %v493 = vand.u32 %v25, 4294901760
    %v494 = vsub.f32 %v25, %v493
    %v495 = vand.u32 %v494, 4294901760
    %496 = vmatpush1.msra.mxu0 %v495
    %497 = vmatprep.subr.mxu0 0.0
    %v498 = vand.u32 %v26, 4294901760
    %v499 = vsub.f32 %v26, %v498
    %v500 = vand.u32 %v499, 4294901760
    %501 = vmatpush1.msra.mxu0 %v500
    %502 = vmatprep.subr.mxu0 0.0
    %v503 = vand.u32 %v27, 4294901760
    %v504 = vsub.f32 %v27, %v503
    %v505 = vand.u32 %v504, 4294901760
    %506 = vmatpush1.msra.mxu0 %v505
    %507 = vmatprep.subr.mxu0 0.0
    %v508 = vand.u32 %v28, 4294901760
    %v509 = vsub.f32 %v28, %v508
    %v510 = vand.u32 %v509, 4294901760
    %511 = vmatpush1.msra.mxu0 %v510
    %512 = vmatprep.subr.mxu0 0.0
    %v513 = vand.u32 %v29, 4294901760
    %v514 = vsub.f32 %v29, %v513
    %v515 = vand.u32 %v514, 4294901760
    %516 = vmatpush1.msra.mxu0 %v515
    %517 = vmatprep.subr.mxu0 0.0
    %v518 = vand.u32 %v30, 4294901760
    %v519 = vsub.f32 %v30, %v518
    %v520 = vand.u32 %v519, 4294901760
    %521 = vmatpush1.msra.mxu0 %v520
    %522 = vmatprep.subr.mxu0 0.0
    %v523 = vand.u32 %v31, 4294901760
    %v524 = vsub.f32 %v31, %v523
    %v525 = vand.u32 %v524, 4294901760
    %526 = vmatpush1.msra.mxu0 %v525
    %527 = vmatprep.subr.mxu0 0.0
    %v528 = vand.u32 %v32, 4294901760
    %v529 = vsub.f32 %v32, %v528
    %v530 = vand.u32 %v529, 4294901760
    %531 = vmatpush1.msra.mxu0 %v530
    %532 = vmatprep.subr.mxu0 0.0
    %v533 = vand.u32 %v33, 4294901760
    %v534 = vsub.f32 %v33, %v533
    %v535 = vand.u32 %v534, 4294901760
    %536 = vmatpush1.msra.mxu0 %v535
    %537 = vmatprep.subr.mxu0 0.0
    %v538 = vand.u32 %v34, 4294901760
    %v539 = vsub.f32 %v34, %v538
    %v540 = vand.u32 %v539, 4294901760
    %541 = vmatpush1.msra.mxu0 %v540
    %542 = vmatprep.subr.mxu0 0.0
    %v543 = vand.u32 %v35, 4294901760
    %v544 = vsub.f32 %v35, %v543
    %v545 = vand.u32 %v544, 4294901760
    %546 = vmatpush1.msra.mxu0 %v545
    %547 = vmatprep.subr.mxu0 0.0
    %v548 = vand.u32 %v36, 4294901760
    %v549 = vsub.f32 %v36, %v548
    %v550 = vand.u32 %v549, 4294901760
    %551 = vmatpush1.msra.mxu0 %v550
    %552 = vmatprep.subr.mxu0 0.0
    %553 = vmatpush1.msra.mxu0 0.0
    %554 = vmatprep.subr.mxu0 0.0
    %555 = vmatpush1.msra.mxu0 0.0
    %556 = vmatprep.subr.mxu0 0.0
    %557 = vmatpush1.msra.mxu0 0.0
    %558 = vmatprep.subr.mxu0 0.0
    %559 = vmatpush1.msra.mxu0 0.0
    %560 = vmatprep.subr.mxu0 0.0
    %561 = vmatpush1.msra.mxu0 0.0
    %562 = vmatprep.subr.mxu0 0.0
    %563 = vmatpush1.msra.mxu0 0.0
    %564 = vmatprep.subr.mxu0 0.0
    %565 = vmatpush1.msra.mxu0 0.0
    %566 = vmatprep.subr.mxu0 0.0
    %567 = vmatpush1.msra.mxu0 0.0
    %568 = vmatprep.subr.mxu0 0.0
    %569 = vmatpush1.msra.mxu0 0.0
    %570 = vmatprep.subr.mxu0 0.0
    %571 = vmatpush1.msra.mxu0 0.0
    %572 = vmatprep.subr.mxu0 0.0
    %573 = vmatpush1.msra.mxu0 0.0
    %574 = vmatprep.subr.mxu0 0.0
    %575 = vmatpush1.msra.mxu0 0.0
    %576 = vmatprep.subr.mxu0 0.0
    %577 = vmatpush1.msra.mxu0 0.0
    %578 = vmatprep.subr.mxu0 0.0
    %579 = vmatpush1.msra.mxu0 0.0
    %580 = vmatprep.subr.mxu0 0.0
    %581 = vmatpush1.msra.mxu0 0.0
    %582 = vmatprep.subr.mxu0 0.0
    %583 = vmatpush1.msra.mxu0 0.0
    %584 = vmatprep.mubr.f32.mxu0 0.0
    %v585 = vand.u32 %v20, 4294901760
    %586 = vmatmul.mubr.f32.gmra.mrb[0].mxu0 %v585
    %v587 = vpop.f32.mrb[0].mxu0
    %v588 = vadd.f32 %v469, %v587
    %v589 = vpop.f32.mrb[0].mxu0
    %590 = vdwg.mxu0
    %591 = vmatprep.subr.mxu0 0.0
    %v592 = vand.u32 %v21, 4294901760
    %593 = vmatpush1.msra.mxu0 %v592
    %594 = vmatprep.subr.mxu0 0.0
    %v595 = vand.u32 %v22, 4294901760
    %596 = vmatpush1.msra.mxu0 %v595
    %597 = vmatprep.subr.mxu0 0.0
    %v598 = vand.u32 %v23, 4294901760
    %599 = vmatpush1.msra.mxu0 %v598
    %600 = vmatprep.subr.mxu0 0.0
    %v601 = vand.u32 %v24, 4294901760
    %602 = vmatpush1.msra.mxu0 %v601
    %603 = vmatprep.subr.mxu0 0.0
    %v604 = vand.u32 %v25, 4294901760
    %605 = vmatpush1.msra.mxu0 %v604
    %606 = vmatprep.subr.mxu0 0.0
    %v607 = vand.u32 %v26, 4294901760
    %608 = vmatpush1.msra.mxu0 %v607
    %609 = vmatprep.subr.mxu0 0.0
    %v610 = vand.u32 %v27, 4294901760
    %611 = vmatpush1.msra.mxu0 %v610
    %612 = vmatprep.subr.mxu0 0.0
    %v613 = vand.u32 %v28, 4294901760
    %614 = vmatpush1.msra.mxu0 %v613
    %615 = vmatprep.subr.mxu0 0.0
    %v616 = vand.u32 %v29, 4294901760
    %617 = vmatpush1.msra.mxu0 %v616
    %618 = vmatprep.subr.mxu0 0.0
    %v619 = vand.u32 %v30, 4294901760
    %620 = vmatpush1.msra.mxu0 %v619
    %621 = vmatprep.subr.mxu0 0.0
    %v622 = vand.u32 %v31, 4294901760
    %623 = vmatpush1.msra.mxu0 %v622
    %624 = vmatprep.subr.mxu0 0.0
    %v625 = vand.u32 %v32, 4294901760
    %626 = vmatpush1.msra.mxu0 %v625
    %627 = vmatprep.subr.mxu0 0.0
    %v628 = vand.u32 %v33, 4294901760
    %629 = vmatpush1.msra.mxu0 %v628
    %630 = vmatprep.subr.mxu0 0.0
    %v631 = vand.u32 %v34, 4294901760
    %632 = vmatpush1.msra.mxu0 %v631
    %633 = vmatprep.subr.mxu0 0.0
    %v634 = vand.u32 %v35, 4294901760
    %635 = vmatpush1.msra.mxu0 %v634
    %636 = vmatprep.subr.mxu0 0.0
    %v637 = vand.u32 %v36, 4294901760
    %638 = vmatpush1.msra.mxu0 %v637
    %639 = vmatprep.subr.mxu0 0.0
    %640 = vmatpush1.msra.mxu0 0.0
    %641 = vmatprep.subr.mxu0 0.0
    %642 = vmatpush1.msra.mxu0 0.0
    %643 = vmatprep.subr.mxu0 0.0
    %644 = vmatpush1.msra.mxu0 0.0
    %645 = vmatprep.subr.mxu0 0.0
    %646 = vmatpush1.msra.mxu0 0.0
    %647 = vmatprep.subr.mxu0 0.0
    %648 = vmatpush1.msra.mxu0 0.0
    %649 = vmatprep.subr.mxu0 0.0
    %650 = vmatpush1.msra.mxu0 0.0
    %651 = vmatprep.subr.mxu0 0.0
    %652 = vmatpush1.msra.mxu0 0.0
    %653 = vmatprep.subr.mxu0 0.0
    %654 = vmatpush1.msra.mxu0 0.0
    %655 = vmatprep.subr.mxu0 0.0
    %656 = vmatpush1.msra.mxu0 0.0
    %657 = vmatprep.subr.mxu0 0.0
    %658 = vmatpush1.msra.mxu0 0.0
    %659 = vmatprep.subr.mxu0 0.0
    %660 = vmatpush1.msra.mxu0 0.0
    %661 = vmatprep.subr.mxu0 0.0
    %662 = vmatpush1.msra.mxu0 0.0
    %663 = vmatprep.subr.mxu0 0.0
    %664 = vmatpush1.msra.mxu0 0.0
    %665 = vmatprep.subr.mxu0 0.0
    %666 = vmatpush1.msra.mxu0 0.0
    %667 = vmatprep.subr.mxu0 0.0
    %668 = vmatpush1.msra.mxu0 0.0
    %669 = vmatprep.subr.mxu0 0.0
    %670 = vmatpush1.msra.mxu0 0.0
    %671 = vmatprep.mubr.f32.mxu0 0.0
    %v672 = vand.u32 %v20, 4294901760
    %673 = vmatmul.mubr.f32.gmra.mrb[0].mxu0 %v672
    %v674 = vpop.f32.mrb[0].mxu0
    %v675 = vadd.f32 %v588, %v674
    %v676 = vpop.f32.mrb[0].mxu0
    %677 = vdwg.mxu0
    %v678 = vmul.f32 %v675, 0.03125
    %v679 = vadd.f32 %v678, 1e-05
    %v680 = vrsqrt.pop %v679
    %v681 = vld [vmem:[%s3] sm:$0xf]
    %vm682 = vcmask 31744
    %v684 = vsel %vm682, %v680, 0
    %vm686 = vcmask 1043456
    %v688 = vsel %vm686, %v681, 0
    %690 = vmatprep.subr.mxu0 0.0
    %v691 = vand.u32 %v688, 4294901760
    %692 = vmatpush1.msra.mxu0 %v691
    %693 = vmatprep.subr.mxu0 0.0
    %694 = vmatpush1.msra.mxu0 0.0
    %695 = vmatprep.subr.mxu0 0.0
    %696 = vmatpush1.msra.mxu0 0.0
    %697 = vmatprep.subr.mxu0 0.0
    %698 = vmatpush1.msra.mxu0 0.0
    %699 = vmatprep.subr.mxu0 0.0
    %700 = vmatpush1.msra.mxu0 0.0
    %701 = vmatprep.subr.mxu0 0.0
    %702 = vmatpush1.msra.mxu0 0.0
    %703 = vmatprep.subr.mxu0 0.0
    %704 = vmatpush1.msra.mxu0 0.0
    %705 = vmatprep.subr.mxu0 0.0
    %706 = vmatpush1.msra.mxu0 0.0
    %707 = vmatprep.subr.mxu0 0.0
    %708 = vmatpush1.msra.mxu0 0.0
    %709 = vmatprep.subr.mxu0 0.0
    %710 = vmatpush1.msra.mxu0 0.0
    %711 = vmatprep.subr.mxu0 0.0
    %712 = vmatpush1.msra.mxu0 0.0
    %713 = vmatprep.subr.mxu0 0.0
    %714 = vmatpush1.msra.mxu0 0.0
    %715 = vmatprep.subr.mxu0 0.0
    %716 = vmatpush1.msra.mxu0 0.0
    %717 = vmatprep.subr.mxu0 0.0
    %718 = vmatpush1.msra.mxu0 0.0
    %719 = vmatprep.subr.mxu0 0.0
    %720 = vmatpush1.msra.mxu0 0.0
    %721 = vmatprep.subr.mxu0 0.0
    %722 = vmatpush1.msra.mxu0 0.0
    %723 = vmatprep.subr.mxu0 0.0
    %724 = vmatpush1.msra.mxu0 0.0
    %725 = vmatprep.subr.mxu0 0.0
    %726 = vmatpush1.msra.mxu0 0.0
    %727 = vmatprep.subr.mxu0 0.0
    %728 = vmatpush1.msra.mxu0 0.0
    %729 = vmatprep.subr.mxu0 0.0
    %730 = vmatpush1.msra.mxu0 0.0
    %731 = vmatprep.subr.mxu0 0.0
    %732 = vmatpush1.msra.mxu0 0.0
    %733 = vmatprep.subr.mxu0 0.0
    %734 = vmatpush1.msra.mxu0 0.0
    %735 = vmatprep.subr.mxu0 0.0
    %736 = vmatpush1.msra.mxu0 0.0
    %737 = vmatprep.subr.mxu0 0.0
    %738 = vmatpush1.msra.mxu0 0.0
    %739 = vmatprep.subr.mxu0 0.0
    %740 = vmatpush1.msra.mxu0 0.0
    %741 = vmatprep.subr.mxu0 0.0
    %742 = vmatpush1.msra.mxu0 0.0
    %743 = vmatprep.subr.mxu0 0.0
    %744 = vmatpush1.msra.mxu0 0.0
    %745 = vmatprep.subr.mxu0 0.0
    %746 = vmatpush1.msra.mxu0 0.0
    %747 = vmatprep.subr.mxu0 0.0
    %748 = vmatpush1.msra.mxu0 0.0
    %749 = vmatprep.subr.mxu0 0.0
    %750 = vmatpush1.msra.mxu0 0.0
    %751 = vmatprep.subr.mxu0 0.0
    %752 = vmatpush1.msra.mxu0 0.0
    %753 = vmatprep.subr.mxu0 0.0
    %754 = vmatpush1.msra.mxu0 0.0
    %755 = vmatprep.mubr.f32.mxu0 0.0
    %v756 = vand.u32 %v684, 4294901760
    %v757 = vsub.f32 %v684, %v756
    %v758 = vand.u32 %v757, 4294901760
    %v759 = vsub.f32 %v757, %v758
    %v760 = vand.u32 %v759, 4294901760
    %761 = vmatmul.mubr.f32.gmra.mrb[0].mxu0 %v760
    %v762 = vpop.f32.mrb[0].mxu0
    %v763 = vadd.f32 0.0, %v762
    %v764 = vpop.f32.mrb[0].mxu0
    %765 = vdwg.mxu0
    %766 = vmatprep.subr.mxu0 0.0
    %v767 = vand.u32 %v688, 4294901760
    %v768 = vsub.f32 %v688, %v767
    %v769 = vand.u32 %v768, 4294901760
    %v770 = vsub.f32 %v768, %v769
    %v771 = vand.u32 %v770, 4294901760
    %772 = vmatpush1.msra.mxu0 %v771
    %773 = vmatprep.subr.mxu0 0.0
    %774 = vmatpush1.msra.mxu0 0.0
    %775 = vmatprep.subr.mxu0 0.0
    %776 = vmatpush1.msra.mxu0 0.0
    %777 = vmatprep.subr.mxu0 0.0
    %778 = vmatpush1.msra.mxu0 0.0
    %779 = vmatprep.subr.mxu0 0.0
    %780 = vmatpush1.msra.mxu0 0.0
    %781 = vmatprep.subr.mxu0 0.0
    %782 = vmatpush1.msra.mxu0 0.0
    %783 = vmatprep.subr.mxu0 0.0
    %784 = vmatpush1.msra.mxu0 0.0
    %785 = vmatprep.subr.mxu0 0.0
    %786 = vmatpush1.msra.mxu0 0.0
    %787 = vmatprep.subr.mxu0 0.0
    %788 = vmatpush1.msra.mxu0 0.0
    %789 = vmatprep.subr.mxu0 0.0
    %790 = vmatpush1.msra.mxu0 0.0
    %791 = vmatprep.subr.mxu0 0.0
    %792 = vmatpush1.msra.mxu0 0.0
    %793 = vmatprep.subr.mxu0 0.0
    %794 = vmatpush1.msra.mxu0 0.0
    %795 = vmatprep.subr.mxu0 0.0
    %796 = vmatpush1.msra.mxu0 0.0
    %797 = vmatprep.subr.mxu0 0.0
    %798 = vmatpush1.msra.mxu0 0.0
    %799 = vmatprep.subr.mxu0 0.0
    %800 = vmatpush1.msra.mxu0 0.0
    %801 = vmatprep.subr.mxu0 0.0
    %802 = vmatpush1.msra.mxu0 0.0
    %803 = vmatprep.subr.mxu0 0.0
    %804 = vmatpush1.msra.mxu0 0.0
    %805 = vmatprep.subr.mxu0 0.0
    %806 = vmatpush1.msra.mxu0 0.0
    %807 = vmatprep.subr.mxu0 0.0
    %808 = vmatpush1.msra.mxu0 0.0
    %809 = vmatprep.subr.mxu0 0.0
    %810 = vmatpush1.msra.mxu0 0.0
    %811 = vmatprep.subr.mxu0 0.0
    %812 = vmatpush1.msra.mxu0 0.0
    %813 = vmatprep.subr.mxu0 0.0
    %814 = vmatpush1.msra.mxu0 0.0
    %815 = vmatprep.subr.mxu0 0.0
    %816 = vmatpush1.msra.mxu0 0.0
    %817 = vmatprep.subr.mxu0 0.0
    %818 = vmatpush1.msra.mxu0 0.0
    %819 = vmatprep.subr.mxu0 0.0
    %820 = vmatpush1.msra.mxu0 0.0
    %821 = vmatprep.subr.mxu0 0.0
    %822 = vmatpush1.msra.mxu0 0.0
    %823 = vmatprep.subr.mxu0 0.0
    %824 = vmatpush1.msra.mxu0 0.0
    %825 = vmatprep.subr.mxu0 0.0
    %826 = vmatpush1.msra.mxu0 0.0
    %827 = vmatprep.subr.mxu0 0.0
    %828 = vmatpush1.msra.mxu0 0.0
    %829 = vmatprep.subr.mxu0 0.0
    %830 = vmatpush1.msra.mxu0 0.0
    %831 = vmatprep.subr.mxu0 0.0
    %832 = vmatpush1.msra.mxu0 0.0
    %833 = vmatprep.subr.mxu0 0.0
    %834 = vmatpush1.msra.mxu0 0.0
    %835 = vmatprep.mubr.f32.mxu0 0.0
    %v836 = vand.u32 %v684, 4294901760
    %837 = vmatmul.mubr.f32.gmra.mrb[0].mxu0 %v836
    %v838 = vpop.f32.mrb[0].mxu0
    %v839 = vadd.f32 %v763, %v838
    %v840 = vpop.f32.mrb[0].mxu0
    %841 = vdwg.mxu0
    %842 = vmatprep.subr.mxu0 0.0
    %v843 = vand.u32 %v688, 4294901760
    %v844 = vsub.f32 %v688, %v843
    %845 = vmatpush1.msra.mxu0 %v844
    %846 = vmatprep.subr.mxu0 0.0
    %847 = vmatpush1.msra.mxu0 0.0
    %848 = vmatprep.subr.mxu0 0.0
    %849 = vmatpush1.msra.mxu0 0.0
    %850 = vmatprep.subr.mxu0 0.0
    %851 = vmatpush1.msra.mxu0 0.0
    %852 = vmatprep.subr.mxu0 0.0
    %853 = vmatpush1.msra.mxu0 0.0
    %854 = vmatprep.subr.mxu0 0.0
    %855 = vmatpush1.msra.mxu0 0.0
    %856 = vmatprep.subr.mxu0 0.0
    %857 = vmatpush1.msra.mxu0 0.0
    %858 = vmatprep.subr.mxu0 0.0
    %859 = vmatpush1.msra.mxu0 0.0
    %860 = vmatprep.subr.mxu0 0.0
    %861 = vmatpush1.msra.mxu0 0.0
    %862 = vmatprep.subr.mxu0 0.0
    %863 = vmatpush1.msra.mxu0 0.0
    %864 = vmatprep.subr.mxu0 0.0
    %865 = vmatpush1.msra.mxu0 0.0
    %866 = vmatprep.subr.mxu0 0.0
    %867 = vmatpush1.msra.mxu0 0.0
    %868 = vmatprep.subr.mxu0 0.0
    %869 = vmatpush1.msra.mxu0 0.0
    %870 = vmatprep.subr.mxu0 0.0
    %871 = vmatpush1.msra.mxu0 0.0
    %872 = vmatprep.subr.mxu0 0.0
    %873 = vmatpush1.msra.mxu0 0.0
    %874 = vmatprep.subr.mxu0 0.0
    %875 = vmatpush1.msra.mxu0 0.0
    %876 = vmatprep.subr.mxu0 0.0
    %877 = vmatpush1.msra.mxu0 0.0
    %878 = vmatprep.subr.mxu0 0.0
    %879 = vmatpush1.msra.mxu0 0.0
    %880 = vmatprep.subr.mxu0 0.0
    %881 = vmatpush1.msra.mxu0 0.0
    %882 = vmatprep.subr.mxu0 0.0
    %883 = vmatpush1.msra.mxu0 0.0
    %884 = vmatprep.subr.mxu0 0.0
    %885 = vmatpush1.msra.mxu0 0.0
    %886 = vmatprep.subr.mxu0 0.0
    %887 = vmatpush1.msra.mxu0 0.0
    %888 = vmatprep.subr.mxu0 0.0
    %889 = vmatpush1.msra.mxu0 0.0
    %890 = vmatprep.subr.mxu0 0.0
    %891 = vmatpush1.msra.mxu0 0.0
    %892 = vmatprep.subr.mxu0 0.0
    %893 = vmatpush1.msra.mxu0 0.0
    %894 = vmatprep.subr.mxu0 0.0
    %895 = vmatpush1.msra.mxu0 0.0
    %896 = vmatprep.subr.mxu0 0.0
    %897 = vmatpush1.msra.mxu0 0.0
    %898 = vmatprep.subr.mxu0 0.0
    %899 = vmatpush1.msra.mxu0 0.0
    %900 = vmatprep.subr.mxu0 0.0
    %901 = vmatpush1.msra.mxu0 0.0
    %902 = vmatprep.subr.mxu0 0.0
    %903 = vmatpush1.msra.mxu0 0.0
    %904 = vmatprep.subr.mxu0 0.0
    %905 = vmatpush1.msra.mxu0 0.0
    %906 = vmatprep.subr.mxu0 0.0
    %907 = vmatpush1.msra.mxu0 0.0
    %908 = vmatprep.mubr.f32.mxu0 0.0
    %v909 = vand.u32 %v684, 4294901760
    %v910 = vsub.f32 %v684, %v909
    %911 = vmatmul.mubr.f32.gmra.mrb[0].mxu0 %v910
    %v912 = vpop.f32.mrb[0].mxu0
    %v913 = vadd.f32 %v839, %v912
    %v914 = vpop.f32.mrb[0].mxu0
    %915 = vdwg.mxu0
    %916 = vmatprep.subr.mxu0 0.0
    %v917 = vand.u32 %v688, 4294901760
    %918 = vmatpush1.msra.mxu0 %v917
    %919 = vmatprep.subr.mxu0 0.0
    %920 = vmatpush1.msra.mxu0 0.0
    %921 = vmatprep.subr.mxu0 0.0
    %922 = vmatpush1.msra.mxu0 0.0
    %923 = vmatprep.subr.mxu0 0.0
    %924 = vmatpush1.msra.mxu0 0.0
    %925 = vmatprep.subr.mxu0 0.0
    %926 = vmatpush1.msra.mxu0 0.0
    %927 = vmatprep.subr.mxu0 0.0
    %928 = vmatpush1.msra.mxu0 0.0
    %929 = vmatprep.subr.mxu0 0.0
    %930 = vmatpush1.msra.mxu0 0.0
    %931 = vmatprep.subr.mxu0 0.0
    %932 = vmatpush1.msra.mxu0 0.0
    %933 = vmatprep.subr.mxu0 0.0
    %934 = vmatpush1.msra.mxu0 0.0
    %935 = vmatprep.subr.mxu0 0.0
    %936 = vmatpush1.msra.mxu0 0.0
    %937 = vmatprep.subr.mxu0 0.0
    %938 = vmatpush1.msra.mxu0 0.0
    %939 = vmatprep.subr.mxu0 0.0
    %940 = vmatpush1.msra.mxu0 0.0
    %941 = vmatprep.subr.mxu0 0.0
    %942 = vmatpush1.msra.mxu0 0.0
    %943 = vmatprep.subr.mxu0 0.0
    %944 = vmatpush1.msra.mxu0 0.0
    %945 = vmatprep.subr.mxu0 0.0
    %946 = vmatpush1.msra.mxu0 0.0
    %947 = vmatprep.subr.mxu0 0.0
    %948 = vmatpush1.msra.mxu0 0.0
    %949 = vmatprep.subr.mxu0 0.0
    %950 = vmatpush1.msra.mxu0 0.0
    %951 = vmatprep.subr.mxu0 0.0
    %952 = vmatpush1.msra.mxu0 0.0
    %953 = vmatprep.subr.mxu0 0.0
    %954 = vmatpush1.msra.mxu0 0.0
    %955 = vmatprep.subr.mxu0 0.0
    %956 = vmatpush1.msra.mxu0 0.0
    %957 = vmatprep.subr.mxu0 0.0
    %958 = vmatpush1.msra.mxu0 0.0
    %959 = vmatprep.subr.mxu0 0.0
    %960 = vmatpush1.msra.mxu0 0.0
    %961 = vmatprep.subr.mxu0 0.0
    %962 = vmatpush1.msra.mxu0 0.0
    %963 = vmatprep.subr.mxu0 0.0
    %964 = vmatpush1.msra.mxu0 0.0
    %965 = vmatprep.subr.mxu0 0.0
    %966 = vmatpush1.msra.mxu0 0.0
    %967 = vmatprep.subr.mxu0 0.0
    %968 = vmatpush1.msra.mxu0 0.0
    %969 = vmatprep.subr.mxu0 0.0
    %970 = vmatpush1.msra.mxu0 0.0
    %971 = vmatprep.subr.mxu0 0.0
    %972 = vmatpush1.msra.mxu0 0.0
    %973 = vmatprep.subr.mxu0 0.0
    %974 = vmatpush1.msra.mxu0 0.0
    %975 = vmatprep.subr.mxu0 0.0
    %976 = vmatpush1.msra.mxu0 0.0
    %977 = vmatprep.subr.mxu0 0.0
    %978 = vmatpush1.msra.mxu0 0.0
    %979 = vmatprep.subr.mxu0 0.0
    %980 = vmatpush1.msra.mxu0 0.0
    %981 = vmatprep.mubr.f32.mxu0 0.0
    %v982 = vand.u32 %v684, 4294901760
    %v983 = vsub.f32 %v684, %v982
    %v984 = vand.u32 %v983, 4294901760
    %985 = vmatmul.mubr.f32.gmra.mrb[0].mxu0 %v984
    %v986 = vpop.f32.mrb[0].mxu0
    %v987 = vadd.f32 %v913, %v986
    %v988 = vpop.f32.mrb[0].mxu0
    %989 = vdwg.mxu0
    %990 = vmatprep.subr.mxu0 0.0
    %v991 = vand.u32 %v688, 4294901760
    %v992 = vsub.f32 %v688, %v991
    %v993 = vand.u32 %v992, 4294901760
    %994 = vmatpush1.msra.mxu0 %v993
    %995 = vmatprep.subr.mxu0 0.0
    %996 = vmatpush1.msra.mxu0 0.0
    %997 = vmatprep.subr.mxu0 0.0
    %998 = vmatpush1.msra.mxu0 0.0
    %999 = vmatprep.subr.mxu0 0.0
    %1000 = vmatpush1.msra.mxu0 0.0
    %1001 = vmatprep.subr.mxu0 0.0
    %1002 = vmatpush1.msra.mxu0 0.0
    %1003 = vmatprep.subr.mxu0 0.0
    %1004 = vmatpush1.msra.mxu0 0.0
    %1005 = vmatprep.subr.mxu0 0.0
    %1006 = vmatpush1.msra.mxu0 0.0
    %1007 = vmatprep.subr.mxu0 0.0
    %1008 = vmatpush1.msra.mxu0 0.0
    %1009 = vmatprep.subr.mxu0 0.0
    %1010 = vmatpush1.msra.mxu0 0.0
    %1011 = vmatprep.subr.mxu0 0.0
    %1012 = vmatpush1.msra.mxu0 0.0
    %1013 = vmatprep.subr.mxu0 0.0
    %1014 = vmatpush1.msra.mxu0 0.0
    %1015 = vmatprep.subr.mxu0 0.0
    %1016 = vmatpush1.msra.mxu0 0.0
    %1017 = vmatprep.subr.mxu0 0.0
    %1018 = vmatpush1.msra.mxu0 0.0
    %1019 = vmatprep.subr.mxu0 0.0
    %1020 = vmatpush1.msra.mxu0 0.0
    %1021 = vmatprep.subr.mxu0 0.0
    %1022 = vmatpush1.msra.mxu0 0.0
    %1023 = vmatprep.subr.mxu0 0.0
    %1024 = vmatpush1.msra.mxu0 0.0
    %1025 = vmatprep.subr.mxu0 0.0
    %1026 = vmatpush1.msra.mxu0 0.0
    %1027 = vmatprep.subr.mxu0 0.0
    %1028 = vmatpush1.msra.mxu0 0.0
    %1029 = vmatprep.subr.mxu0 0.0
    %1030 = vmatpush1.msra.mxu0 0.0
    %1031 = vmatprep.subr.mxu0 0.0
    %1032 = vmatpush1.msra.mxu0 0.0
    %1033 = vmatprep.subr.mxu0 0.0
    %1034 = vmatpush1.msra.mxu0 0.0
    %1035 = vmatprep.subr.mxu0 0.0
    %1036 = vmatpush1.msra.mxu0 0.0
    %1037 = vmatprep.subr.mxu0 0.0
    %1038 = vmatpush1.msra.mxu0 0.0
    %1039 = vmatprep.subr.mxu0 0.0
    %1040 = vmatpush1.msra.mxu0 0.0
    %1041 = vmatprep.subr.mxu0 0.0
    %1042 = vmatpush1.msra.mxu0 0.0
    %1043 = vmatprep.subr.mxu0 0.0
    %1044 = vmatpush1.msra.mxu0 0.0
    %1045 = vmatprep.subr.mxu0 0.0
    %1046 = vmatpush1.msra.mxu0 0.0
    %1047 = vmatprep.subr.mxu0 0.0
    %1048 = vmatpush1.msra.mxu0 0.0
    %1049 = vmatprep.subr.mxu0 0.0
    %1050 = vmatpush1.msra.mxu0 0.0
    %1051 = vmatprep.subr.mxu0 0.0
    %1052 = vmatpush1.msra.mxu0 0.0
    %1053 = vmatprep.subr.mxu0 0.0
    %1054 = vmatpush1.msra.mxu0 0.0
    %1055 = vmatprep.subr.mxu0 0.0
    %1056 = vmatpush1.msra.mxu0 0.0
    %1057 = vmatprep.mubr.f32.mxu0 0.0
    %v1058 = vand.u32 %v684, 4294901760
    %1059 = vmatmul.mubr.f32.gmra.mrb[0].mxu0 %v1058
    %v1060 = vpop.f32.mrb[0].mxu0
    %v1061 = vadd.f32 %v987, %v1060
    %v1062 = vpop.f32.mrb[0].mxu0
    %1063 = vdwg.mxu0
    %1064 = vmatprep.subr.mxu0 0.0
    %v1065 = vand.u32 %v688, 4294901760
    %1066 = vmatpush1.msra.mxu0 %v1065
    %1067 = vmatprep.subr.mxu0 0.0
    %1068 = vmatpush1.msra.mxu0 0.0
    %1069 = vmatprep.subr.mxu0 0.0
    %1070 = vmatpush1.msra.mxu0 0.0
    %1071 = vmatprep.subr.mxu0 0.0
    %1072 = vmatpush1.msra.mxu0 0.0
    %1073 = vmatprep.subr.mxu0 0.0
    %1074 = vmatpush1.msra.mxu0 0.0
    %1075 = vmatprep.subr.mxu0 0.0
    %1076 = vmatpush1.msra.mxu0 0.0
    %1077 = vmatprep.subr.mxu0 0.0
    %1078 = vmatpush1.msra.mxu0 0.0
    %1079 = vmatprep.subr.mxu0 0.0
    %1080 = vmatpush1.msra.mxu0 0.0
    %1081 = vmatprep.subr.mxu0 0.0
    %1082 = vmatpush1.msra.mxu0 0.0
    %1083 = vmatprep.subr.mxu0 0.0
    %1084 = vmatpush1.msra.mxu0 0.0
    %1085 = vmatprep.subr.mxu0 0.0
    %1086 = vmatpush1.msra.mxu0 0.0
    %1087 = vmatprep.subr.mxu0 0.0
    %1088 = vmatpush1.msra.mxu0 0.0
    %1089 = vmatprep.subr.mxu0 0.0
    %1090 = vmatpush1.msra.mxu0 0.0
    %1091 = vmatprep.subr.mxu0 0.0
    %1092 = vmatpush1.msra.mxu0 0.0
    %1093 = vmatprep.subr.mxu0 0.0
    %1094 = vmatpush1.msra.mxu0 0.0
    %1095 = vmatprep.subr.mxu0 0.0
    %1096 = vmatpush1.msra.mxu0 0.0
    %1097 = vmatprep.subr.mxu0 0.0
    %1098 = vmatpush1.msra.mxu0 0.0
    %1099 = vmatprep.subr.mxu0 0.0
    %1100 = vmatpush1.msra.mxu0 0.0
    %1101 = vmatprep.subr.mxu0 0.0
    %1102 = vmatpush1.msra.mxu0 0.0
    %1103 = vmatprep.subr.mxu0 0.0
    %1104 = vmatpush1.msra.mxu0 0.0
    %1105 = vmatprep.subr.mxu0 0.0
    %1106 = vmatpush1.msra.mxu0 0.0
    %1107 = vmatprep.subr.mxu0 0.0
    %1108 = vmatpush1.msra.mxu0 0.0
    %1109 = vmatprep.subr.mxu0 0.0
    %1110 = vmatpush1.msra.mxu0 0.0
    %1111 = vmatprep.subr.mxu0 0.0
    %1112 = vmatpush1.msra.mxu0 0.0
    %1113 = vmatprep.subr.mxu0 0.0
    %1114 = vmatpush1.msra.mxu0 0.0
    %1115 = vmatprep.subr.mxu0 0.0
    %1116 = vmatpush1.msra.mxu0 0.0
    %1117 = vmatprep.subr.mxu0 0.0
    %1118 = vmatpush1.msra.mxu0 0.0
    %1119 = vmatprep.subr.mxu0 0.0
    %1120 = vmatpush1.msra.mxu0 0.0
    %1121 = vmatprep.subr.mxu0 0.0
    %1122 = vmatpush1.msra.mxu0 0.0
    %1123 = vmatprep.subr.mxu0 0.0
    %1124 = vmatpush1.msra.mxu0 0.0
    %1125 = vmatprep.subr.mxu0 0.0
    %1126 = vmatpush1.msra.mxu0 0.0
    %1127 = vmatprep.subr.mxu0 0.0
    %1128 = vmatpush1.msra.mxu0 0.0
    %1129 = vmatprep.mubr.f32.mxu0 0.0
    %v1130 = vand.u32 %v684, 4294901760
    %1131 = vmatmul.mubr.f32.gmra.mrb[0].mxu0 %v1130
    %v1132 = vpop.f32.mrb[0].mxu0
    %v1133 = vadd.f32 %v1061, %v1132
    %v1134 = vpop.f32.mrb[0].mxu0
    %1135 = vdwg.mxu0
    %v1136 = vmul.f32 %v19, %v1133
    %v1137 = vld [vmem:[%s1] sm:$0x1]
    %v1138 = vunpack.c.l.bf16 %v1137
    %v1139 = vlaneseq
    %v1140 = vshrl.u32 %v1139, 7
    %v1141 = vsub.s32 0, %v1140
    %v1142 = vrot.slane %v1138, %v1141
    %v1143 = vmul.f32 %v1136, %v1142
    %v1144 = vpack.c.bf16 %v1143, %v1143
    %1145 = vst [vmem:[#allocation2] sm:$0x3] %v1144
    // Predicated region
    $region18: #{tpu_custom_call.1} parent=1 // pred_check
      _
    $region19: #{tpu_custom_call.1} parent=1 // pred_check_branch
      %1147 = sbr.rel (0) target = $region21
    $region20: #{tpu_custom_call.1} parent=1 // pred_region
      %s1149 = ssub.s32 32, 32
      %1150 = vsyncadd [#allocation3], %s1149
      %s1152 = sshll.u32 [#allocation2], 4
      %s1153 = int_to_ptr.vmem [resolvable:$true] %s1152
      %1155 = dma.vmem_to_hbm [thread:$0]  %s1153, 32, %s4, [#allocation3]
    $region21: #{tpu_custom_call.1} parent=1 // pred_fallthru
      _
    // Predicated region
    $region22: #{tpu_custom_call.1} parent=1 // pred_check
      _
    $region23: #{tpu_custom_call.1} parent=1 // pred_check_branch
      %1157 = sbr.rel (0) target = $region25
    $region24: #{tpu_custom_call.1} parent=1 // pred_region
      %1158 = dma.done [#allocation3], 32
    $region25: #{tpu_custom_call.1} parent=1 // pred_fallthru
      _
    %1159 = vsyncpa [#allocation3], 1

</llo_original>
